<compile_context>
chip_gen: v7x
topology: tpu7x:2x2x1
jax: 0.10.0
libtpu: 0.0.40
codegen_flags: <defaults>
</compile_context>

<pallas_src>
import jax
import jax.numpy as jnp
from jax.experimental import pallas as pl
from jax.experimental.pallas import tpu as pltpu

_LANE = 128                    # vreg lane width
_TARGET_BLOCK_BYTES = 4 << 20  # ~4 MiB blocks: good across v5e/v6e/v7x VMEM/BW


def _sublane_granularity(dtype) -> int:
    # 32-bit dtypes tile as (8,128); bf16 packs 2/sublane -> (16,128);
    # int8/fp8 pack 4/sublane -> (32,128).  Full tiles keep stores unmasked.
    itemsize = jnp.dtype(dtype).itemsize
    return 8 * max(1, 4 // itemsize)


def _make_copy_kernel(fuse_fn):
    if fuse_fn is None:
        def kernel(x_ref, o_ref):
            o_ref[...] = x_ref[...]
    else:
        def kernel(x_ref, o_ref):
            # Fused elementwise work rides for free under the HBM-bound DMA
            # (VPU/EUP slots are idle in a pure copy).
            o_ref[...] = fuse_fn(x_ref[...]).astype(o_ref.dtype)
    return kernel


def flatten_layer(x: jax.Array, *, fuse_fn=None, force_kernel: bool = False) -> jax.Array:
    """Pallas equivalent of FlattenLayer.forward: x.view(x.shape[0], -1).

    With no `fuse_fn` the flatten is metadata-only, so no kernel is launched
    unless `force_kernel=True` (kept for testing / as an explicit fusion site).
    """
    n = x.shape[0]
    flat = 1
    for d in x.shape[1:]:
        flat *= d
    x2d = x.reshape(n, flat)  # metadata-only: this already *is* the flatten

    if fuse_fn is None and not force_kernel:
        return x2d

    itemsize = jnp.dtype(x.dtype).itemsize
    total = n * flat
    g = _sublane_granularity(x.dtype)
    kernel = _make_copy_kernel(fuse_fn)
    cost = pl.CostEstimate(flops=0, transcendentals=0,
                           bytes_accessed=2 * total * itemsize)

    if total % (g * _LANE) == 0:
        # ---- lane-dense streamed copy over a (rows, cols) view ----
        # Widest cols that is a multiple of 128, divides total, and leaves
        # rows a multiple of the sublane granularity (cols=128 always works).
        cols = _LANE
        for c in range(min(total, 512 * _LANE), _LANE - 1, -_LANE):
            if total % c == 0 and (total // c) % g == 0:
                cols = c
                break
        rows = total // cols

        bytes_per_row = cols * itemsize
        block_rows = max(g, min(rows,
                                (_TARGET_BLOCK_BYTES // bytes_per_row) // g * g))
        num_blocks = pl.cdiv(rows, block_rows)
        # Give megacore / both v7x TensorCores >= 2 grid steps when possible.
        if num_blocks < 2 and rows >= 2 * g:
            block_rows = max(g, (block_rows // 2) // g * g)
            num_blocks = pl.cdiv(rows, block_rows)

        block_bytes = block_rows * bytes_per_row
        # input + output, each double-buffered = 4 live buffers (+ headroom);
        # capped well under v7x's 64 MiB physical VMEM.
        vmem_limit = min(64 << 20, max(16 << 20, 4 * block_bytes + (4 << 20)))

        stream = x2d.reshape(rows, cols)  # metadata-only
        out = pl.pallas_call(
            kernel,
            out_shape=jax.ShapeDtypeStruct((rows, cols), x.dtype),
            grid=(num_blocks,),
            in_specs=[pl.BlockSpec((block_rows, cols), lambda i: (i, 0))],
            out_specs=pl.BlockSpec((block_rows, cols), lambda i: (i, 0)),
            compiler_params=pltpu.CompilerParams(
                dimension_semantics=("parallel",),
                vmem_limit_bytes=vmem_limit,
            ),
            cost_estimate=cost,
        )(stream)
        return out.reshape(n, flat)  # metadata-only

    # ---- fallback for oddly sized totals: tile along the batch dimension ----
    # Block dims equal the full array dims (n <= 8) or bn is a multiple of 8,
    # so the (8,128) constraint is satisfied; cdiv grid masks a partial tail.
    if n <= 8:
        bn = n
    else:
        bn = max(8, min(n // 8 * 8,
                        (_TARGET_BLOCK_BYTES // max(1, flat * itemsize)) // 8 * 8))
    num_blocks = pl.cdiv(n, bn)
    block_bytes = bn * flat * itemsize
    vmem_limit = min(64 << 20, max(16 << 20, 4 * block_bytes + (4 << 20)))
    return pl.pallas_call(
        kernel,
        out_shape=jax.ShapeDtypeStruct((n, flat), x.dtype),
        grid=(num_blocks,),
        in_specs=[pl.BlockSpec((bn, flat), lambda i: (i, 0))],
        out_specs=pl.BlockSpec((bn, flat), lambda i: (i, 0)),
        compiler_params=pltpu.CompilerParams(
            dimension_semantics=("parallel",),
            vmem_limit_bytes=vmem_limit,
        ),
        cost_estimate=cost,
    )(x2d)


if __name__ == "__main__":
    key = jax.random.PRNGKey(0)
    # Typical conv feature map: (N=2, C=4, H=16, W=16)
    x = jax.random.normal(key, (2, 4, 16, 16), dtype=jnp.float32)
    ref = x.reshape(x.shape[0], -1)

    # Default fast path: metadata-only reshape, no pallas_call launched.
    fast = jax.block_until_ready(flatten_layer(x))
    assert fast.shape == ref.shape == (2, 4 * 16 * 16)
    assert bool(jnp.array_equal(fast, ref))

    # Pallas fusion-site path: lane-dense streamed copy kernel.
    out = jax.block_until_ready(flatten_layer(x, force_kernel=True))
    assert out.shape == ref.shape
    assert out.dtype == ref.dtype
    assert bool(jnp.array_equal(out, ref))

    # Fallback path: total elements not a multiple of (sublane*lane).
    x_odd = jax.random.normal(jax.random.PRNGKey(0), (3, 5, 7), dtype=jnp.float32)
    out_odd = jax.block_until_ready(flatten_layer(x_odd, force_kernel=True))
    assert bool(jnp.array_equal(out_odd, x_odd.reshape(3, -1)))

    print("KERNEL_OK")
</pallas_src>

<mosaic_0001>
module attributes {stable_mosaic.version = 11 : i64} {
  func.func @kernel(%arg0: i32, %arg1: memref<8x256xf32, #tpu.memory_space<vmem>>, %arg2: memref<8x256xf32, #tpu.memory_space<vmem>>) attributes {dimension_semantics = [#tpu.dimension_semantics<parallel>], iteration_bounds = array<i64: 1>, scalar_prefetch = 0 : i64, scratch_operands = 0 : i64, tpu.core_type = #tpu.core_type<tc>, window_params = [{transform_indices = @transform_0, window_bounds = array<i64: 8, 256>}, {transform_indices = @transform_1, window_bounds = array<i64: 8, 256>}]} {
    %c0 = arith.constant 0 : index
    %c0_0 = arith.constant 0 : index
    %0 = vector.load %arg1[%c0, %c0_0] : memref<8x256xf32, #tpu.memory_space<vmem>>, vector<8x256xf32>
    %c0_1 = arith.constant 0 : index
    %c0_2 = arith.constant 0 : index
    %1 = vector.load %arg2[%c0_1, %c0_2] : memref<8x256xf32, #tpu.memory_space<vmem>>, vector<8x256xf32>
    tpu.vector_store %arg2[%c0_1, %c0_2], %0 {strides = array<i32>} : memref<8x256xf32, #tpu.memory_space<vmem>>, vector<8x256xf32>,
    return
  }
  func.func @transform_0(%arg0: i32) -> (i32, i32) {
    %c0_i32 = arith.constant 0 : i32
    %c0_i32_0 = arith.constant 0 : i32
    return %arg0, %c0_i32 : i32, i32
  }
  func.func @transform_1(%arg0: i32) -> (i32, i32) {
    %c0_i32 = arith.constant 0 : i32
    %c0_i32_0 = arith.constant 0 : i32
    return %arg0, %c0_i32 : i32, i32
  }
}

</mosaic_0001>

<llo_original>
// kernel: tpu_custom_call.1
$region0: #{tpu_custom_call.1}
  #allocation0 [shape = 'u32[]', space=smem, size = 0x4, offset = 0x4, fixed_abs, tag = 'smem constant byte address 0x4 - core index']
  #allocation1 [shape = 'u32[144,128]{1,0:T(1,128)}', space=vmem, size = 0x12000, scoped, tag = 'internal scratch']
  %s0 = inlined_call_operand.hbm [shape: f32[8,256], index: 0, kind: input, shape index: {}]
  %s1 = inlined_call_operand.hbm [shape: f32[8,256], index: 1, kind: output, shape index: {}]
  %s2 = sld [smem:[#allocation0]]
  $region18: #{tpu_custom_call.1} parent=0
    _
  %s4 = ssub.s32 1, %s2
  %s5 = scalar_select 0, %s4, %s2
  $region1: #{tpu_custom_call.1} parent=0
    #allocation2 [shape = 'u8[8192]{0}', space=vmem, size = 0x2000, scoped, tag = 'input window, operand 0, single buffered']
    #allocation3 [shape = 's32[1]{0}', space=sflag, size = 0x4, scoped, tag = 'scoped memory for tpu_custom_call.1']
    #allocation4 [shape = 's32[1]{0}', space=sflag, size = 0x4, scoped, tag = 'scoped memory for tpu_custom_call.1']
    #allocation5 [shape = 'u8[8192]{0}', space=vmem, size = 0x2000, scoped, tag = 'output window, operand 0, single buffered']
    %6 = vsyncpa [#allocation3], 0
    %7 = vsyncpa [#allocation4], 0
    // Predicated region
    $region2: #{tpu_custom_call.1} parent=1 // pred_check
      _
    $region3: #{tpu_custom_call.1} parent=1 // pred_check_branch
      %9 = sbr.rel (0) target = $region5
    $region4: #{tpu_custom_call.1} parent=1 // pred_region
      %s11 = ssub.s32 256, 256
      %12 = vsyncadd [#allocation3], %s11
      %s14 = sshll.u32 [#allocation2], 4
      %s15 = int_to_ptr.vmem [resolvable:$true] %s14
      %17 = dma.hbm_to_vmem [thread:$0]  %s0, 256, %s15, [#allocation3]
    $region5: #{tpu_custom_call.1} parent=1 // pred_fallthru
      _
    // Predicated region
    $region6: #{tpu_custom_call.1} parent=1 // pred_check
      _
    $region7: #{tpu_custom_call.1} parent=1 // pred_check_branch
      %19 = sbr.rel (0) target = $region9
    $region8: #{tpu_custom_call.1} parent=1 // pred_region
      %20 = dma.done [#allocation3], 256
    $region9: #{tpu_custom_call.1} parent=1 // pred_fallthru
      _
    %v21 = vld [vmem:[#allocation2] sm:$0xff]
    %v22 = vld [vmem:[#allocation2 + $0x8] sm:$0xff]
    %23 = vst [vmem:[#allocation5] sm:$0xff] %v21
    %24 = vst [vmem:[#allocation5 + $0x8] sm:$0xff] %v22
    // Predicated region
    $region10: #{tpu_custom_call.1} parent=1 // pred_check
      _
    $region11: #{tpu_custom_call.1} parent=1 // pred_check_branch
      %26 = sbr.rel (0) target = $region13
    $region12: #{tpu_custom_call.1} parent=1 // pred_region
      %s28 = ssub.s32 256, 256
      %29 = vsyncadd [#allocation4], %s28
      %s31 = sshll.u32 [#allocation5], 4
      %s32 = int_to_ptr.vmem [resolvable:$true] %s31
      %34 = dma.vmem_to_hbm [thread:$0]  %s32, 256, %s1, [#allocation4]
    $region13: #{tpu_custom_call.1} parent=1 // pred_fallthru
      _
    // Predicated region
    $region14: #{tpu_custom_call.1} parent=1 // pred_check
      _
    $region15: #{tpu_custom_call.1} parent=1 // pred_check_branch
      %36 = sbr.rel (0) target = $region17
    $region16: #{tpu_custom_call.1} parent=1 // pred_region
      %37 = dma.done [#allocation4], 256
    $region17: #{tpu_custom_call.1} parent=1 // pred_fallthru
      _
    %38 = vsyncpa [#allocation3], 1
    %39 = vsyncpa [#allocation4], 1

</llo_original>
